<compile_context>
chip_gen: v7x
topology: tpu7x:2x2x1
jax: 0.10.0
libtpu: 0.0.40
codegen_flags: <defaults>
</compile_context>

<pallas_src>
import jax
import jax.numpy as jnp
from jax import lax
from jax.experimental import pallas as pl
from jax.experimental.pallas import tpu as pltpu


def _leaky_relu(x, slope=0.01):
    return jnp.where(x > 0, x, slope * x)


def reduce_atomic_kernel(batch_row_ref, batch_col_ref, x_ref, wcat_ref,
                         w1r_ref, att_ref, bias_ref, out_ref):
    N, D = x_ref.shape
    B = out_ref.shape[0]

    x_bf = x_ref[...]                                 # [N, D]  bf16
    batch_row = batch_row_ref[...]                    # [1, N]  i32
    batch_col = batch_col_ref[...]                    # [N, 1]  i32

    # Node<->graph one-hot assignment built from cheap iota compares (no
    # gather).  Out-of-range batch ids simply drop the node (zero column).
    is_bn = lax.broadcasted_iota(jnp.int32, (B, N), 0) == batch_row   # [B, N]
    is_nb = lax.broadcasted_iota(jnp.int32, (N, B), 1) == batch_col   # [N, B]
    onehot_bn = jnp.where(is_bn, 1.0, 0.0).astype(jnp.bfloat16)       # [B, N]
    onehot_nb = jnp.where(is_nb, 1.0, 0.0)                            # [N, B] f32

    # ---- graph features: xm = relu(segment_sum(x, batch)) ---------------
    xm = jnp.dot(onehot_bn, x_bf, preferred_element_type=jnp.float32)  # [B, D]
    xm = jnp.maximum(xm, 0.0)

    # ---- fused node-side matmul: [x @ W1l^T | x @ W2^T] ------------------
    hm = jnp.dot(x_bf, wcat_ref[...],
                 preferred_element_type=jnp.float32)                   # [N, 2D]
    h_l = hm[:, :D]                                                    # x @ W1l^T
    m = hm[:, D:]                                                      # x @ W2^T

    # ---- reassociated right branch: (xm @ W1r^T)[batch] ------------------
    xm_w1r = jnp.dot(xm, w1r_ref[...],
                     preferred_element_type=jnp.float32)               # [B, D]
    xr = jnp.dot(onehot_nb, xm_w1r,
                 preferred_element_type=jnp.float32)                   # [N, D]

    # ---- attention logits (VPU mul + XLU lane reduce, stays [N,1]) -------
    h = _leaky_relu(h_l + xr)                                          # [N, D]
    alpha = jnp.sum(h * att_ref[...], axis=-1, keepdims=True)          # [N, 1]
    alpha = _leaky_relu(alpha)

    # ---- segment softmax, dense in [N, B] space --------------------------
    neg_big = jnp.float32(-1e30)
    masked = jnp.where(is_nb, alpha, neg_big)                          # [N, B]
    seg_max = jnp.max(masked, axis=0, keepdims=True)                   # [1, B]
    exp_w = jnp.where(is_nb, jnp.exp(alpha - seg_max), 0.0)            # [N, B]
    seg_sum = jnp.sum(exp_w, axis=0, keepdims=True)                    # [1, B]
    inv_sum = pl.reciprocal(seg_sum + 1e-16, approx=True)              # [1, B]
    # Each node belongs to exactly one graph -> row-sum recovers its weight.
    node_w = jnp.sum(exp_w * inv_sum, axis=-1, keepdims=True)          # [N, 1]

    # ---- weighted scatter-add of the messages ----------------------------
    m_w = (m * node_w).astype(jnp.bfloat16)                            # [N, D]
    xm_n = jnp.dot(onehot_bn, m_w,
                   preferred_element_type=jnp.float32)                 # [B, D]
    xm_n = xm_n + bias_ref[...]

    # ---- elu + LayerNorm epilogue (f32) -----------------------------------
    y = xm + xm_n
    y = jnp.where(y > 0, y, jnp.exp(jnp.minimum(y, 0.0)) - 1.0)
    mean = jnp.mean(y, axis=-1, keepdims=True)
    var = jnp.mean((y - mean) ** 2, axis=-1, keepdims=True)
    out_ref[...] = ((y - mean) * lax.rsqrt(var + 1e-5)).astype(out_ref.dtype)


def reduce_atomic(x, batch, params, num_graphs):
    N, D = x.shape
    B = num_graphs
    batch_row = batch.reshape(1, N).astype(jnp.int32)
    batch_col = batch.reshape(N, 1).astype(jnp.int32)
    # Fused [W1l^T | W2^T] -> [D, 2D]; bf16 operands for the big MXU matmuls.
    wcat = jnp.concatenate(
        [params["w1l"].T, params["w2"].T], axis=1).astype(jnp.bfloat16)
    w1r_t = params["w1r"].T.astype(jnp.float32)     # tiny B-side matmul: f32
    att2d = params["att"].reshape(1, D).astype(jnp.float32)
    bias2d = params["bias"].reshape(1, D).astype(jnp.float32)

    return pl.pallas_call(
        reduce_atomic_kernel,
        out_shape=jax.ShapeDtypeStruct((B, D), jnp.float32),
        grid=(1,),
        in_specs=[
            pl.BlockSpec((1, N), lambda i: (0, 0)),      # batch (row form)
            pl.BlockSpec((N, 1), lambda i: (0, 0)),      # batch (col form)
            pl.BlockSpec((N, D), lambda i: (0, 0)),      # x (bf16)
            pl.BlockSpec((D, 2 * D), lambda i: (0, 0)),  # [W1l^T | W2^T] (bf16)
            pl.BlockSpec((D, D), lambda i: (0, 0)),      # W1r^T (f32)
            pl.BlockSpec((1, D), lambda i: (0, 0)),      # att
            pl.BlockSpec((1, D), lambda i: (0, 0)),      # bias
        ],
        out_specs=pl.BlockSpec((B, D), lambda i: (0, 0)),
        compiler_params=pltpu.CompilerParams(
            dimension_semantics=("arbitrary",),
            # sized for the whole-problem footprint + headroom; raises v5e's
            # 16 MiB scoped default without exceeding v7x's 64 MiB physical.
            vmem_limit_bytes=32 * 1024 * 1024),
    )(batch_row, batch_col, x.astype(jnp.bfloat16), wcat, w1r_t, att2d, bias2d)


def reduce_atomic_reference(x, batch, params, num_graphs):
    """Pure-JAX f32 reference mirroring the PyTorch module."""
    B = num_graphs
    xm = jnp.maximum(jax.ops.segment_sum(x, batch, B), 0.0)
    xr = xm[batch]
    h = _leaky_relu(x @ params["w1l"].T + xr @ params["w1r"].T)
    alpha = _leaky_relu(jnp.sum(h * params["att"], axis=-1))
    seg_max = jax.ops.segment_max(alpha, batch, B)
    exp_a = jnp.exp(alpha - seg_max[batch])
    denom = jax.ops.segment_sum(exp_a, batch, B)[batch] + 1e-16
    a = exp_a / denom
    msg = (x @ params["w2"].T) * a[:, None]
    xm_n = jax.ops.segment_sum(msg, batch, B) + params["bias"]
    y = xm + xm_n
    y = jnp.where(y > 0, y, jnp.exp(y) - 1.0)
    mean = jnp.mean(y, axis=-1, keepdims=True)
    var = jnp.mean((y - mean) ** 2, axis=-1, keepdims=True)
    return (y - mean) / jnp.sqrt(var + 1e-5)


def _glorot(key, shape):
    fan_in, fan_out = shape[-1], shape[0]
    limit = jnp.sqrt(6.0 / (fan_in + fan_out))
    return jax.random.uniform(key, shape, jnp.float32, -limit, limit)


if __name__ == "__main__":
    D = 128          # feature dim (lane-aligned small stand-in for 256)
    N = 16           # number of nodes
    B = 4            # number of graphs

    key = jax.random.PRNGKey(0)
    k_x, k_1, k_2, k_3, k_4 = jax.random.split(key, 5)

    x = jax.random.normal(k_x, (N, D), jnp.float32)
    batch = jnp.repeat(jnp.arange(B, dtype=jnp.int32), N // B)   # [N], sorted

    params = {
        "w1l": _glorot(k_1, (D, D)),       # lin1_l.weight  [out, in]
        "w1r": _glorot(k_2, (D, D)),       # lin1_r.weight  [out, in]
        "w2": _glorot(k_3, (D, D)),        # lin2.weight    [out, in]
        "att": _glorot(k_4, (1, D)),       # att            [1, out_att]
        "bias": jnp.zeros((D,), jnp.float32),
    }

    out = jax.block_until_ready(reduce_atomic(x, batch, params, B))
    ref = reduce_atomic_reference(x, batch, params, B)

    assert out.shape == (B, D)
    max_err = float(jnp.max(jnp.abs(out - ref)))
    # Tolerance reflects bf16 MXU operands; softmax/LayerNorm math is f32.
    assert jnp.allclose(out, ref, rtol=2e-2, atol=3e-2), max_err
    print("KERNEL_OK")
</pallas_src>

<mosaic_0001>
module attributes {stable_mosaic.version = 11 : i64} {
  func.func @reduce_atomic_kernel(%arg0: i32, %arg1: memref<1x16xi32, #tpu.memory_space<vmem>>, %arg2: memref<16x1xi32, #tpu.memory_space<vmem>>, %arg3: memref<16x128xbf16, #tpu.memory_space<vmem>>, %arg4: memref<128x256xbf16, #tpu.memory_space<vmem>>, %arg5: memref<128x128xf32, #tpu.memory_space<vmem>>, %arg6: memref<1x128xf32, #tpu.memory_space<vmem>>, %arg7: memref<1x128xf32, #tpu.memory_space<vmem>>, %arg8: memref<4x128xf32, #tpu.memory_space<vmem>>) attributes {dimension_semantics = [#tpu.dimension_semantics<arbitrary>], iteration_bounds = array<i64: 1>, scalar_prefetch = 0 : i64, scratch_operands = 0 : i64, tpu.core_type = #tpu.core_type<tc>, window_params = [{pipeline_mode = #tpu.pipeline_mode<synchronous>, transform_indices = @transform_0, window_bounds = array<i64: 1, 16>}, {pipeline_mode = #tpu.pipeline_mode<synchronous>, transform_indices = @transform_1, window_bounds = array<i64: 16, 1>}, {pipeline_mode = #tpu.pipeline_mode<synchronous>, transform_indices = @transform_2, window_bounds = array<i64: 16, 128>}, {pipeline_mode = #tpu.pipeline_mode<synchronous>, transform_indices = @transform_3, window_bounds = array<i64: 128, 256>}, {pipeline_mode = #tpu.pipeline_mode<synchronous>, transform_indices = @transform_4, window_bounds = array<i64: 128, 128>}, {pipeline_mode = #tpu.pipeline_mode<synchronous>, transform_indices = @transform_5, window_bounds = array<i64: 1, 128>}, {pipeline_mode = #tpu.pipeline_mode<synchronous>, transform_indices = @transform_6, window_bounds = array<i64: 1, 128>}, {pipeline_mode = #tpu.pipeline_mode<synchronous>, transform_indices = @transform_7, window_bounds = array<i64: 4, 128>}]} {
    %c0 = arith.constant 0 : index
    %c0_0 = arith.constant 0 : index
    %0 = vector.load %arg3[%c0, %c0_0] : memref<16x128xbf16, #tpu.memory_space<vmem>>, vector<16x128xbf16>
    %c0_1 = arith.constant 0 : index
    %c0_2 = arith.constant 0 : index
    %1 = vector.load %arg1[%c0_1, %c0_2] : memref<1x16xi32, #tpu.memory_space<vmem>>, vector<1x16xi32>
    %c0_3 = arith.constant 0 : index
    %c0_4 = arith.constant 0 : index
    %2 = vector.load %arg2[%c0_3, %c0_4] : memref<16x1xi32, #tpu.memory_space<vmem>>, vector<16x1xi32>
    %3 = tpu.iota {dimensions = array<i32: 0>} : vector<4x16xi32>
    %4 = vector.broadcast %1 : vector<1x16xi32> to vector<4x16xi32>
    %5 = arith.cmpi eq, %3, %4 : vector<4x16xi32>
    %6 = tpu.iota {dimensions = array<i32: 1>} : vector<16x4xi32>
    %7 = vector.broadcast %2 : vector<16x1xi32> to vector<16x4xi32>
    %8 = arith.cmpi eq, %6, %7 : vector<16x4xi32>
    %cst = arith.constant 1.000000e+00 : f32
    %cst_5 = arith.constant 0.000000e+00 : f32
    %9 = vector.broadcast %cst : f32 to vector<4x16xf32>
    %10 = vector.broadcast %cst_5 : f32 to vector<4x16xf32>
    %11 = arith.select %5, %9, %10 : vector<4x16xi1>, vector<4x16xf32>
    %12 = arith.truncf %11 : vector<4x16xf32> to vector<4x16xbf16>
    %cst_6 = arith.constant 1.000000e+00 : f32
    %cst_7 = arith.constant 0.000000e+00 : f32
    %13 = vector.broadcast %cst_6 : f32 to vector<16x4xf32>
    %14 = vector.broadcast %cst_7 : f32 to vector<16x4xf32>
    %15 = arith.select %8, %13, %14 : vector<16x4xi1>, vector<16x4xf32>
    %cst_8 = arith.constant dense<0.000000e+00> : vector<4x128xf32>
    %16 = tpu.matmul %12, %0, %cst_8 {dimension_numbers = #tpu.dot_dimension_numbers<[1], [0], [0], [1], [0, 0, 1, 1], [], []>} : vector<4x16xbf16>, vector<16x128xbf16>, vector<4x128xf32> -> vector<4x128xf32>
    %cst_9 = arith.constant 0.000000e+00 : f32
    %17 = vector.broadcast %cst_9 : f32 to vector<4x128xf32>
    %18 = arith.maximumf %16, %17 : vector<4x128xf32>
    %c0_10 = arith.constant 0 : index
    %c0_11 = arith.constant 0 : index
    %19 = vector.load %arg4[%c0_10, %c0_11] : memref<128x256xbf16, #tpu.memory_space<vmem>>, vector<128x256xbf16>
    %cst_12 = arith.constant dense<0.000000e+00> : vector<16x256xf32>
    %20 = tpu.matmul %0, %19, %cst_12 {dimension_numbers = #tpu.dot_dimension_numbers<[1], [0], [0], [1], [0, 0, 1, 1], [], []>} : vector<16x128xbf16>, vector<128x256xbf16>, vector<16x256xf32> -> vector<16x256xf32>
    %21 = vector.extract_strided_slice %20 {offsets = [0, 0], sizes = [16, 128], strides = [1, 1]} : vector<16x256xf32> to vector<16x128xf32>
    %22 = vector.extract_strided_slice %20 {offsets = [0, 128], sizes = [16, 128], strides = [1, 1]} : vector<16x256xf32> to vector<16x128xf32>
    %c0_13 = arith.constant 0 : index
    %c0_14 = arith.constant 0 : index
    %23 = vector.load %arg5[%c0_13, %c0_14] : memref<128x128xf32, #tpu.memory_space<vmem>>, vector<128x128xf32>
    %cst_15 = arith.constant dense<0.000000e+00> : vector<4x128xf32>
    %24 = tpu.matmul %18, %23, %cst_15 {dimension_numbers = #tpu.dot_dimension_numbers<[1], [0], [0], [1], [0, 0, 1, 1], [], []>} : vector<4x128xf32>, vector<128x128xf32>, vector<4x128xf32> -> vector<4x128xf32>
    %cst_16 = arith.constant dense<0.000000e+00> : vector<16x128xf32>
    %25 = tpu.matmul %15, %24, %cst_16 {dimension_numbers = #tpu.dot_dimension_numbers<[1], [0], [0], [1], [0, 0, 1, 1], [], []>} : vector<16x4xf32>, vector<4x128xf32>, vector<16x128xf32> -> vector<16x128xf32>
    %26 = arith.addf %21, %25 : vector<16x128xf32>
    %cst_17 = arith.constant 0.000000e+00 : f32
    %27 = vector.broadcast %cst_17 : f32 to vector<16x128xf32>
    %28 = arith.cmpf ogt, %26, %27 : vector<16x128xf32>
    %cst_18 = arith.constant 0.00999999977 : f32
    %29 = vector.broadcast %cst_18 : f32 to vector<16x128xf32>
    %30 = arith.mulf %29, %26 : vector<16x128xf32>
    %31 = arith.select %28, %26, %30 : vector<16x128xi1>, vector<16x128xf32>
    %c0_19 = arith.constant 0 : index
    %c0_20 = arith.constant 0 : index
    %32 = vector.load %arg6[%c0_19, %c0_20] : memref<1x128xf32, #tpu.memory_space<vmem>>, vector<1x128xf32>
    %33 = vector.broadcast %32 : vector<1x128xf32> to vector<16x128xf32>
    %34 = arith.mulf %31, %33 : vector<16x128xf32>
    %cst_21 = arith.constant dense<0.000000e+00> : vector<16xf32>
    %35 = vector.multi_reduction <add>, %34, %cst_21 [1] : vector<16x128xf32> to vector<16xf32>
    %36 = vector.shape_cast %35 : vector<16xf32> to vector<16x1xf32>
    %cst_22 = arith.constant 0.000000e+00 : f32
    %37 = vector.broadcast %cst_22 : f32 to vector<16x1xf32>
    %38 = arith.cmpf ogt, %36, %37 : vector<16x1xf32>
    %cst_23 = arith.constant 0.00999999977 : f32
    %39 = vector.broadcast %cst_23 : f32 to vector<16x1xf32>
    %40 = arith.mulf %39, %36 : vector<16x1xf32>
    %41 = arith.select %38, %36, %40 : vector<16x1xi1>, vector<16x1xf32>
    %cst_24 = arith.constant -1.000000e+30 : f32
    %42 = vector.shape_cast %41 : vector<16x1xf32> to vector<16x1xf32>
    %43 = vector.broadcast %42 : vector<16x1xf32> to vector<16x4xf32>
    %44 = vector.broadcast %cst_24 : f32 to vector<16x4xf32>
    %45 = arith.select %8, %43, %44 : vector<16x4xi1>, vector<16x4xf32>
    %cst_25 = arith.constant dense<0xFF800000> : vector<4xf32>
    %46 = vector.multi_reduction <maximumf>, %45, %cst_25 [0] : vector<16x4xf32> to vector<4xf32>
    %47 = vector.shape_cast %46 : vector<4xf32> to vector<1x4xf32>
    %48 = vector.broadcast %41 : vector<16x1xf32> to vector<16x4xf32>
    %49 = vector.broadcast %47 : vector<1x4xf32> to vector<16x4xf32>
    %50 = arith.subf %48, %49 : vector<16x4xf32>
    %51 = math.exp %50 : vector<16x4xf32>
    %cst_26 = arith.constant 0.000000e+00 : f32
    %52 = vector.broadcast %cst_26 : f32 to vector<16x4xf32>
    %53 = arith.select %8, %51, %52 : vector<16x4xi1>, vector<16x4xf32>
    %cst_27 = arith.constant dense<0.000000e+00> : vector<4xf32>
    %54 = vector.multi_reduction <add>, %53, %cst_27 [0] : vector<16x4xf32> to vector<4xf32>
    %55 = vector.shape_cast %54 : vector<4xf32> to vector<1x4xf32>
    %cst_28 = arith.constant 1.000000e-16 : f32
    %56 = vector.broadcast %cst_28 : f32 to vector<1x4xf32>
    %57 = arith.addf %55, %56 : vector<1x4xf32>
    %58 = tpu.reciprocal %57 {approx = true} : vector<1x4xf32> -> vector<1x4xf32>
    %59 = vector.broadcast %58 : vector<1x4xf32> to vector<16x4xf32>
    %60 = arith.mulf %53, %59 : vector<16x4xf32>
    %cst_29 = arith.constant dense<0.000000e+00> : vector<16xf32>
    %61 = vector.multi_reduction <add>, %60, %cst_29 [1] : vector<16x4xf32> to vector<16xf32>
    %62 = vector.shape_cast %61 : vector<16xf32> to vector<16x1xf32>
    %63 = vector.broadcast %62 : vector<16x1xf32> to vector<16x128xf32>
    %64 = arith.mulf %22, %63 : vector<16x128xf32>
    %65 = arith.truncf %64 : vector<16x128xf32> to vector<16x128xbf16>
    %cst_30 = arith.constant dense<0.000000e+00> : vector<4x128xf32>
    %66 = tpu.matmul %12, %65, %cst_30 {dimension_numbers = #tpu.dot_dimension_numbers<[1], [0], [0], [1], [0, 0, 1, 1], [], []>} : vector<4x16xbf16>, vector<16x128xbf16>, vector<4x128xf32> -> vector<4x128xf32>
    %c0_31 = arith.constant 0 : index
    %c0_32 = arith.constant 0 : index
    %67 = vector.load %arg7[%c0_31, %c0_32] : memref<1x128xf32, #tpu.memory_space<vmem>>, vector<1x128xf32>
    %68 = vector.broadcast %67 : vector<1x128xf32> to vector<4x128xf32>
    %69 = arith.addf %66, %68 : vector<4x128xf32>
    %70 = arith.addf %18, %69 : vector<4x128xf32>
    %cst_33 = arith.constant 0.000000e+00 : f32
    %71 = vector.broadcast %cst_33 : f32 to vector<4x128xf32>
    %72 = arith.cmpf ogt, %70, %71 : vector<4x128xf32>
    %cst_34 = arith.constant 0.000000e+00 : f32
    %73 = vector.broadcast %cst_34 : f32 to vector<4x128xf32>
    %74 = arith.minimumf %70, %73 : vector<4x128xf32>
    %75 = math.exp %74 : vector<4x128xf32>
    %cst_35 = arith.constant 1.000000e+00 : f32
    %76 = vector.broadcast %cst_35 : f32 to vector<4x128xf32>
    %77 = arith.subf %75, %76 : vector<4x128xf32>
    %78 = arith.select %72, %70, %77 : vector<4x128xi1>, vector<4x128xf32>
    %cst_36 = arith.constant dense<0.000000e+00> : vector<4xf32>
    %79 = vector.multi_reduction <add>, %78, %cst_36 [1] : vector<4x128xf32> to vector<4xf32>
    %80 = vector.shape_cast %79 : vector<4xf32> to vector<4x1xf32>
    %cst_37 = arith.constant 1.280000e+02 : f32
    %81 = vector.broadcast %cst_37 : f32 to vector<4x1xf32>
    %82 = arith.divf %80, %81 : vector<4x1xf32>
    %83 = vector.broadcast %82 : vector<4x1xf32> to vector<4x128xf32>
    %84 = arith.subf %78, %83 : vector<4x128xf32>
    %85 = arith.mulf %84, %84 : vector<4x128xf32>
    %cst_38 = arith.constant dense<0.000000e+00> : vector<4xf32>
    %86 = vector.multi_reduction <add>, %85, %cst_38 [1] : vector<4x128xf32> to vector<4xf32>
    %87 = vector.shape_cast %86 : vector<4xf32> to vector<4x1xf32>
    %cst_39 = arith.constant 1.280000e+02 : f32
    %88 = vector.broadcast %cst_39 : f32 to vector<4x1xf32>
    %89 = arith.divf %87, %88 : vector<4x1xf32>
    %90 = vector.broadcast %82 : vector<4x1xf32> to vector<4x128xf32>
    %91 = arith.subf %78, %90 : vector<4x128xf32>
    %cst_40 = arith.constant 9.99999974E-6 : f32
    %92 = vector.broadcast %cst_40 : f32 to vector<4x1xf32>
    %93 = arith.addf %89, %92 : vector<4x1xf32>
    %94 = math.rsqrt %93 : vector<4x1xf32>
    %95 = vector.broadcast %94 : vector<4x1xf32> to vector<4x128xf32>
    %96 = arith.mulf %91, %95 : vector<4x128xf32>
    %c0_41 = arith.constant 0 : index
    %c0_42 = arith.constant 0 : index
    %97 = vector.load %arg8[%c0_41, %c0_42] : memref<4x128xf32, #tpu.memory_space<vmem>>, vector<4x128xf32>
    tpu.vector_store %arg8[%c0_41, %c0_42], %96 {strides = array<i32>} : memref<4x128xf32, #tpu.memory_space<vmem>>, vector<4x128xf32>,
    return
  }
  func.func @transform_0(%arg0: i32) -> (i32, i32) {
    %c0_i32 = arith.constant 0 : i32
    %c0_i32_0 = arith.constant 0 : i32
    %c0_i32_1 = arith.constant 0 : i32
    return %c0_i32, %c0_i32_0 : i32, i32
  }
  func.func @transform_1(%arg0: i32) -> (i32, i32) {
    %c0_i32 = arith.constant 0 : i32
    %c0_i32_0 = arith.constant 0 : i32
    %c0_i32_1 = arith.constant 0 : i32
    return %c0_i32, %c0_i32_0 : i32, i32
  }
  func.func @transform_2(%arg0: i32) -> (i32, i32) {
    %c0_i32 = arith.constant 0 : i32
    %c0_i32_0 = arith.constant 0 : i32
    %c0_i32_1 = arith.constant 0 : i32
    return %c0_i32, %c0_i32_0 : i32, i32
  }
  func.func @transform_3(%arg0: i32) -> (i32, i32) {
    %c0_i32 = arith.constant 0 : i32
    %c0_i32_0 = arith.constant 0 : i32
    %c0_i32_1 = arith.constant 0 : i32
    return %c0_i32, %c0_i32_0 : i32, i32
  }
  func.func @transform_4(%arg0: i32) -> (i32, i32) {
    %c0_i32 = arith.constant 0 : i32
    %c0_i32_0 = arith.constant 0 : i32
    %c0_i32_1 = arith.constant 0 : i32
    return %c0_i32, %c0_i32_0 : i32, i32
  }
  func.func @transform_5(%arg0: i32) -> (i32, i32) {
    %c0_i32 = arith.constant 0 : i32
    %c0_i32_0 = arith.constant 0 : i32
    %c0_i32_1 = arith.constant 0 : i32
    return %c0_i32, %c0_i32_0 : i32, i32
  }
  func.func @transform_6(%arg0: i32) -> (i32, i32) {
    %c0_i32 = arith.constant 0 : i32
    %c0_i32_0 = arith.constant 0 : i32
    %c0_i32_1 = arith.constant 0 : i32
    return %c0_i32, %c0_i32_0 : i32, i32
  }
  func.func @transform_7(%arg0: i32) -> (i32, i32) {
    %c0_i32 = arith.constant 0 : i32
    %c0_i32_0 = arith.constant 0 : i32
    %c0_i32_1 = arith.constant 0 : i32
    return %c0_i32, %c0_i32_0 : i32, i32
  }
}

</mosaic_0001>

<llo_original>
// kernel: tpu_custom_call.1
$region0: #{tpu_custom_call.1}
  #allocation0 [shape = 'u32[]', space=smem, size = 0x4, offset = 0x4, fixed_abs, tag = 'smem constant byte address 0x4 - core index']
  #allocation1 [shape = 'u32[144,128]{1,0:T(1,128)}', space=vmem, size = 0x12000, scoped, tag = 'internal scratch']
  %s0 = inlined_call_operand.vmem [shape: s32[1,16], index: 0, kind: input, shape index: {}]
  %s1 = inlined_call_operand.vmem [shape: s32[16,1], index: 1, kind: input, shape index: {}]
  %s2 = inlined_call_operand.vmem [shape: bf16[16,128], index: 2, kind: input, shape index: {}]
  %s3 = inlined_call_operand.hbm [shape: bf16[128,256], index: 3, kind: input, shape index: {}]
  %s4 = inlined_call_operand.hbm [shape: f32[128,128], index: 4, kind: input, shape index: {}]
  %s5 = inlined_call_operand.vmem [shape: f32[1,128], index: 5, kind: input, shape index: {}]
  %s6 = inlined_call_operand.vmem [shape: f32[1,128], index: 6, kind: input, shape index: {}]
  %s7 = inlined_call_operand.hbm [shape: f32[4,128], index: 7, kind: output, shape index: {}]
  %s8 = sld [smem:[#allocation0]]
  $region46: #{tpu_custom_call.1} parent=0
    _
  %s10 = ssub.s32 1, %s8
  %s11 = scalar_select 0, %s10, %s8
  $region1: #{tpu_custom_call.1} parent=0
    #allocation2 [shape = 'u8[65536]{0}', space=vmem, size = 0x10000, scoped, tag = 'input window, operand 3, single buffered']
    #allocation3 [shape = 's32[1]{0}', space=sflag, size = 0x4, scoped, tag = 'scoped memory for tpu_custom_call.1']
    #allocation4 [shape = 's32[1]{0}', space=sflag, size = 0x4, scoped, tag = 'scoped memory for tpu_custom_call.1']
    #allocation5 [shape = 'u8[65536]{0}', space=vmem, size = 0x10000, scoped, tag = 'input window, operand 4, single buffered']
    #allocation6 [shape = 's32[1]{0}', space=sflag, size = 0x4, scoped, tag = 'scoped memory for tpu_custom_call.1']
    #allocation7 [shape = 'u8[2048]{0}', space=vmem, size = 0x800, scoped, tag = 'output window, operand 0, single buffered']
    %12 = vsyncpa [#allocation3], 0
    %13 = vsyncpa [#allocation6], 0
    %14 = vsyncpa [#allocation4], 0
    // Predicated region
    $region2: #{tpu_custom_call.1} parent=1 // pred_check
      _
    $region3: #{tpu_custom_call.1} parent=1 // pred_check_branch
      %16 = sbr.rel (0) target = $region5
    $region4: #{tpu_custom_call.1} parent=1 // pred_region
      _
    $region5: #{tpu_custom_call.1} parent=1 // pred_fallthru
      _
    // Predicated region
    $region6: #{tpu_custom_call.1} parent=1 // pred_check
      _
    $region7: #{tpu_custom_call.1} parent=1 // pred_check_branch
      %18 = sbr.rel (0) target = $region9
    $region8: #{tpu_custom_call.1} parent=1 // pred_region
      _
    $region9: #{tpu_custom_call.1} parent=1 // pred_fallthru
      _
    // Predicated region
    $region10: #{tpu_custom_call.1} parent=1 // pred_check
      _
    $region11: #{tpu_custom_call.1} parent=1 // pred_check_branch
      %20 = sbr.rel (0) target = $region13
    $region12: #{tpu_custom_call.1} parent=1 // pred_region
      _
    $region13: #{tpu_custom_call.1} parent=1 // pred_fallthru
      _
    // Predicated region
    $region14: #{tpu_custom_call.1} parent=1 // pred_check
      _
    $region15: #{tpu_custom_call.1} parent=1 // pred_check_branch
      %22 = sbr.rel (0) target = $region17
    $region16: #{tpu_custom_call.1} parent=1 // pred_region
      %s24 = ssub.s32 2048, 2048
      %25 = vsyncadd [#allocation3], %s24
      %s26 = sshll.u32 [#allocation2], 4
      %s27 = int_to_ptr.vmem [resolvable:$true] %s26
      %32 = dma.hbm_to_vmem [thread:$0]  %s3, 2048, %s27, [#allocation3], 128, 128, 8
    $region17: #{tpu_custom_call.1} parent=1 // pred_fallthru
      _
    // Predicated region
    $region18: #{tpu_custom_call.1} parent=1 // pred_check
      _
    $region19: #{tpu_custom_call.1} parent=1 // pred_check_branch
      %34 = sbr.rel (0) target = $region21
    $region20: #{tpu_custom_call.1} parent=1 // pred_region
      %s36 = ssub.s32 2048, 2048
      %37 = vsyncadd [#allocation6], %s36
      %s38 = sshll.u32 [#allocation5], 4
      %s39 = int_to_ptr.vmem [resolvable:$true] %s38
      %44 = dma.hbm_to_vmem [thread:$0]  %s4, 2048, %s39, [#allocation6], 128, 128, 8
    $region21: #{tpu_custom_call.1} parent=1 // pred_fallthru
      _
    // Predicated region
    $region22: #{tpu_custom_call.1} parent=1 // pred_check
      _
    $region23: #{tpu_custom_call.1} parent=1 // pred_check_branch
      %46 = sbr.rel (0) target = $region25
    $region24: #{tpu_custom_call.1} parent=1 // pred_region
      _
    $region25: #{tpu_custom_call.1} parent=1 // pred_fallthru
      _
    // Predicated region
    $region26: #{tpu_custom_call.1} parent=1 // pred_check
      _
    $region27: #{tpu_custom_call.1} parent=1 // pred_check_branch
      %48 = sbr.rel (0) target = $region29
    $region28: #{tpu_custom_call.1} parent=1 // pred_region
      _
    $region29: #{tpu_custom_call.1} parent=1 // pred_fallthru
      _
    // Predicated region
    $region30: #{tpu_custom_call.1} parent=1 // pred_check
      _
    $region31: #{tpu_custom_call.1} parent=1 // pred_check_branch
      %50 = sbr.rel (0) target = $region33
    $region32: #{tpu_custom_call.1} parent=1 // pred_region
      %51 = dma.done [#allocation3], 2048
    $region33: #{tpu_custom_call.1} parent=1 // pred_fallthru
      _
    // Predicated region
    $region34: #{tpu_custom_call.1} parent=1 // pred_check
      _
    $region35: #{tpu_custom_call.1} parent=1 // pred_check_branch
      %53 = sbr.rel (0) target = $region37
    $region36: #{tpu_custom_call.1} parent=1 // pred_region
      %54 = dma.done [#allocation6], 2048
    $region37: #{tpu_custom_call.1} parent=1 // pred_fallthru
      _
    %v56 = vld [vmem:[%s2] sm:$0xf]
    %v57 = vld [vmem:[%s2 + $0x4] sm:$0xf]
    %v58 = vld [vmem:[%s0] sm:$0x1]
    %v59 = vld [vmem:[%s1] sm:$0xff]
    %v60 = vld [vmem:[%s1 + $0x8] sm:$0xff]
    %v61 = vlaneseq
    %v62 = vshrl.u32 %v61, 7
    %v63 = vlaneseq
    %v64 = vshrl.u32 %v63, 7
    %v65 = vsub.s32 0, %v64
    %v66 = vrot.slane %v58, %v65
    %vm67 = vcmp.eq.s32.totalorder %v62, %v66
    %v68 = vlaneseq
    %v69 = vand.u32 %v68, 127
    %70 = vset.pattern.permute.xlu0 0
    %71 = vperm.xlu0 %70, %v59
    %v72 = vpop.permute.xlu0 %71
    %73 = vset.pattern.permute.xlu0 0
    %74 = vperm.xlu0 %73, %v60
    %v75 = vpop.permute.xlu0 %74
    %vm76 = vcmp.eq.s32.totalorder %v69, %v72
    %vm77 = vcmp.eq.s32.totalorder %v69, %v75
    %v78 = vsel %vm67, 1.0, 0.0
    %v79 = vpack.c.bf16 %v78, %v78
    %v80 = vsel %vm76, 1.0, 0.0
    %v81 = vsel %vm77, 1.0, 0.0
    %v84 = vunpack.c.l.b16 %v56
    %v85 = vunpack.c.l.b16 %v57
    %v86 = vpack.c.b16 %v85, %v84
    %vm88 = vcmask 130048
    %v90 = vsel %vm88, %v79, 0
    %92 = vmatprep.subr.bf16.mxu0 0
    %93 = vmatpush1.bf16.msra.mxu0 %v86
    %94 = vmatprep.subr.bf16.mxu0 0
    %95 = vmatpush1.bf16.msra.mxu0 0
    %96 = vmatprep.subr.bf16.mxu0 0
    %97 = vmatpush1.bf16.msra.mxu0 0
    %98 = vmatprep.subr.bf16.mxu0 0
    %99 = vmatpush1.bf16.msra.mxu0 0
    %100 = vmatprep.subr.bf16.mxu0 0
    %101 = vmatpush1.bf16.msra.mxu0 0
    %102 = vmatprep.subr.bf16.mxu0 0
    %103 = vmatpush1.bf16.msra.mxu0 0
    %104 = vmatprep.subr.bf16.mxu0 0
    %105 = vmatpush1.bf16.msra.mxu0 0
    %106 = vmatprep.subr.bf16.mxu0 0
    %107 = vmatpush1.bf16.msra.mxu0 0
    %108 = vmatprep.subr.bf16.mxu0 0
    %109 = vmatpush1.bf16.msra.mxu0 0
    %110 = vmatprep.subr.bf16.mxu0 0
    %111 = vmatpush1.bf16.msra.mxu0 0
    %112 = vmatprep.subr.bf16.mxu0 0
    %113 = vmatpush1.bf16.msra.mxu0 0
    %114 = vmatprep.subr.bf16.mxu0 0
    %115 = vmatpush1.bf16.msra.mxu0 0
    %116 = vmatprep.subr.bf16.mxu0 0
    %117 = vmatpush1.bf16.msra.mxu0 0
    %118 = vmatprep.subr.bf16.mxu0 0
    %119 = vmatpush1.bf16.msra.mxu0 0
    %120 = vmatprep.subr.bf16.mxu0 0
    %121 = vmatpush1.bf16.msra.mxu0 0
    %122 = vmatprep.subr.bf16.mxu0 0
    %123 = vmatpush1.bf16.msra.mxu0 0
    %124 = vmatprep.mubr.bf16.mxu0 0
    %125 = vmatmul.mubr.bf16.gmra.mrb[0].mxu0 %v90
    %v126 = vpop.f32.mrb[0].mxu0
    %v127 = vadd.f32 0.0, %v126
    %v128 = vpop.f32.mrb[0].mxu0
    %v129 = vpop.f32.mrb[0].mxu0
    %v130 = vpop.f32.mrb[0].mxu0
    %131 = vdwg.mxu0
    %v132 = vmax.f32 %v127, 0.0
    %v133 = vld [vmem:[#allocation2] sm:$0xff]
    %v134 = vld [vmem:[#allocation2 + $0x8] sm:$0xff]
    %v135 = vld [vmem:[#allocation2 + $0x10] sm:$0xff]
    %v136 = vld [vmem:[#allocation2 + $0x18] sm:$0xff]
    %v137 = vld [vmem:[#allocation2 + $0x20] sm:$0xff]
    %v138 = vld [vmem:[#allocation2 + $0x28] sm:$0xff]
    %v139 = vld [vmem:[#allocation2 + $0x30] sm:$0xff]
    %v140 = vld [vmem:[#allocation2 + $0x38] sm:$0xff]
    %v141 = vld [vmem:[#allocation2 + $0x40] sm:$0xff]
    %v142 = vld [vmem:[#allocation2 + $0x48] sm:$0xff]
    %v143 = vld [vmem:[#allocation2 + $0x50] sm:$0xff]
    %v144 = vld [vmem:[#allocation2 + $0x58] sm:$0xff]
    %v145 = vld [vmem:[#allocation2 + $0x60] sm:$0xff]
    %v146 = vld [vmem:[#allocation2 + $0x68] sm:$0xff]
    %v147 = vld [vmem:[#allocation2 + $0x70] sm:$0xff]
    %v148 = vld [vmem:[#allocation2 + $0x78] sm:$0xff]
    %v165 = vunpack.c.l.b16 %v133
    %v166 = vunpack.c.h.b16 %v133
    %v167 = vunpack.c.l.b16 %v134
    %v168 = vunpack.c.h.b16 %v134
    %v169 = vunpack.c.l.b16 %v135
    %v170 = vunpack.c.h.b16 %v135
    %v171 = vunpack.c.l.b16 %v136
    %v172 = vunpack.c.h.b16 %v136
    %v173 = vunpack.c.l.b16 %v137
    %v174 = vunpack.c.h.b16 %v137
    %v175 = vunpack.c.l.b16 %v138
    %v176 = vunpack.c.h.b16 %v138
    %v177 = vunpack.c.l.b16 %v139
    %v178 = vunpack.c.h.b16 %v139
    %v179 = vunpack.c.l.b16 %v140
    %v180 = vunpack.c.h.b16 %v140
    %v181 = vunpack.c.l.b16 %v141
    %v182 = vunpack.c.h.b16 %v141
    %v183 = vunpack.c.l.b16 %v142
    %v184 = vunpack.c.h.b16 %v142
    %v185 = vunpack.c.l.b16 %v143
    %v186 = vunpack.c.h.b16 %v143
    %v187 = vunpack.c.l.b16 %v144
    %v188 = vunpack.c.h.b16 %v144
    %v189 = vunpack.c.l.b16 %v145
    %v190 = vunpack.c.h.b16 %v145
    %v191 = vunpack.c.l.b16 %v146
    %v192 = vunpack.c.h.b16 %v146
    %v193 = vunpack.c.l.b16 %v147
    %v194 = vunpack.c.h.b16 %v147
    %v195 = vunpack.c.l.b16 %v148
    %v196 = vunpack.c.h.b16 %v148
    %v197 = vpack.c.b16 %v167, %v165
    %v198 = vpack.c.b16 %v168, %v166
    %v199 = vpack.c.b16 %v171, %v169
    %v200 = vpack.c.b16 %v172, %v170
    %v201 = vpack.c.b16 %v175, %v173
    %v202 = vpack.c.b16 %v176, %v174
    %v203 = vpack.c.b16 %v179, %v177
    %v204 = vpack.c.b16 %v180, %v178
    %v205 = vpack.c.b16 %v183, %v181
    %v206 = vpack.c.b16 %v184, %v182
    %v207 = vpack.c.b16 %v187, %v185
    %v208 = vpack.c.b16 %v188, %v186
    %v209 = vpack.c.b16 %v191, %v189
    %v210 = vpack.c.b16 %v192, %v190
    %v211 = vpack.c.b16 %v195, %v193
    %v212 = vpack.c.b16 %v196, %v194
    %229 = vmatprep.subr.bf16.mxu0 %v198
    %230 = vmatpush1.bf16.msra.mxu0 %v197
    %231 = vmatprep.subr.bf16.mxu0 %v200
    %232 = vmatpush1.bf16.msra.mxu0 %v199
    %233 = vmatprep.subr.bf16.mxu0 %v202
    %234 = vmatpush1.bf16.msra.mxu0 %v201
    %235 = vmatprep.subr.bf16.mxu0 %v204
    %236 = vmatpush1.bf16.msra.mxu0 %v203
    %237 = vmatprep.subr.bf16.mxu0 %v206
    %238 = vmatpush1.bf16.msra.mxu0 %v205
    %239 = vmatprep.subr.bf16.mxu0 %v208
    %240 = vmatpush1.bf16.msra.mxu0 %v207
    %241 = vmatprep.subr.bf16.mxu0 %v210
    %242 = vmatpush1.bf16.msra.mxu0 %v209
    %243 = vmatprep.subr.bf16.mxu0 %v212
    %244 = vmatpush1.bf16.msra.mxu0 %v211
    %245 = vmatprep.subr.bf16.mxu0 0
    %246 = vmatpush1.bf16.msra.mxu0 0
    %247 = vmatprep.subr.bf16.mxu0 0
    %248 = vmatpush1.bf16.msra.mxu0 0
    %249 = vmatprep.subr.bf16.mxu0 0
    %250 = vmatpush1.bf16.msra.mxu0 0
    %251 = vmatprep.subr.bf16.mxu0 0
    %252 = vmatpush1.bf16.msra.mxu0 0
    %253 = vmatprep.subr.bf16.mxu0 0
    %254 = vmatpush1.bf16.msra.mxu0 0
    %255 = vmatprep.subr.bf16.mxu0 0
    %256 = vmatpush1.bf16.msra.mxu0 0
    %257 = vmatprep.subr.bf16.mxu0 0
    %258 = vmatpush1.bf16.msra.mxu0 0
    %259 = vmatprep.subr.bf16.mxu0 0
    %260 = vmatpush1.bf16.msra.mxu0 0
    %261 = vmatprep.mubr.bf16.mxu0 0
    %262 = vmatmul.mubr.bf16.gmra.mrb[0].mxu0 %v86
    %v263 = vpop.f32.mrb[0].mxu0
    %v264 = vadd.f32 0.0, %v263
    %v265 = vpop.f32.mrb[0].mxu0
    %v266 = vadd.f32 0.0, %v265
    %v267 = vpop.f32.mrb[0].mxu0
    %v268 = vadd.f32 0.0, %v267
    %v269 = vpop.f32.mrb[0].mxu0
    %v270 = vadd.f32 0.0, %v269
    %271 = vdwg.mxu0
    %v272 = vld [vmem:[#allocation5] sm:$0xff]
    %v273 = vld [vmem:[#allocation5 + $0x8] sm:$0xff]
    %v274 = vld [vmem:[#allocation5 + $0x10] sm:$0xff]
    %v275 = vld [vmem:[#allocation5 + $0x18] sm:$0xff]
    %v276 = vld [vmem:[#allocation5 + $0x20] sm:$0xff]
    %v277 = vld [vmem:[#allocation5 + $0x28] sm:$0xff]
    %v278 = vld [vmem:[#allocation5 + $0x30] sm:$0xff]
    %v279 = vld [vmem:[#allocation5 + $0x38] sm:$0xff]
    %v280 = vld [vmem:[#allocation5 + $0x40] sm:$0xff]
    %v281 = vld [vmem:[#allocation5 + $0x48] sm:$0xff]
    %v282 = vld [vmem:[#allocation5 + $0x50] sm:$0xff]
    %v283 = vld [vmem:[#allocation5 + $0x58] sm:$0xff]
    %v284 = vld [vmem:[#allocation5 + $0x60] sm:$0xff]
    %v285 = vld [vmem:[#allocation5 + $0x68] sm:$0xff]
    %v286 = vld [vmem:[#allocation5 + $0x70] sm:$0xff]
    %v287 = vld [vmem:[#allocation5 + $0x78] sm:$0xff]
    %288 = vmatprep.subr.mxu0 0.0
    %289 = vmatpush1.msra.mxu0 %v272
    %290 = vmatprep.subr.mxu0 0.0
    %291 = vmatpush1.msra.mxu0 %v273
    %292 = vmatprep.subr.mxu0 0.0
    %293 = vmatpush1.msra.mxu0 %v274
    %294 = vmatprep.subr.mxu0 0.0
    %295 = vmatpush1.msra.mxu0 %v275
    %296 = vmatprep.subr.mxu0 0.0
    %297 = vmatpush1.msra.mxu0 %v276
    %298 = vmatprep.subr.mxu0 0.0
    %299 = vmatpush1.msra.mxu0 %v277
    %300 = vmatprep.subr.mxu0 0.0
    %301 = vmatpush1.msra.mxu0 %v278
    %302 = vmatprep.subr.mxu0 0.0
    %303 = vmatpush1.msra.mxu0 %v279
    %304 = vmatprep.subr.mxu0 0.0
    %305 = vmatpush1.msra.mxu0 %v280
    %306 = vmatprep.subr.mxu0 0.0
    %307 = vmatpush1.msra.mxu0 %v281
    %308 = vmatprep.subr.mxu0 0.0
    %309 = vmatpush1.msra.mxu0 %v282
    %310 = vmatprep.subr.mxu0 0.0
    %311 = vmatpush1.msra.mxu0 %v283
    %312 = vmatprep.subr.mxu0 0.0
    %313 = vmatpush1.msra.mxu0 %v284
    %314 = vmatprep.subr.mxu0 0.0
    %315 = vmatpush1.msra.mxu0 %v285
    %316 = vmatprep.subr.mxu0 0.0
    %317 = vmatpush1.msra.mxu0 %v286
    %318 = vmatprep.subr.mxu0 0.0
    %319 = vmatpush1.msra.mxu0 %v287
    %320 = vmatprep.subr.mxu0 0.0
    %321 = vmatpush1.msra.mxu0 0.0
    %322 = vmatprep.subr.mxu0 0.0
    %323 = vmatpush1.msra.mxu0 0.0
    %324 = vmatprep.subr.mxu0 0.0
    %325 = vmatpush1.msra.mxu0 0.0
    %326 = vmatprep.subr.mxu0 0.0
    %327 = vmatpush1.msra.mxu0 0.0
    %328 = vmatprep.subr.mxu0 0.0
    %329 = vmatpush1.msra.mxu0 0.0
    %330 = vmatprep.subr.mxu0 0.0
    %331 = vmatpush1.msra.mxu0 0.0
    %332 = vmatprep.subr.mxu0 0.0
    %333 = vmatpush1.msra.mxu0 0.0
    %334 = vmatprep.subr.mxu0 0.0
    %335 = vmatpush1.msra.mxu0 0.0
    %336 = vmatprep.subr.mxu0 0.0
    %337 = vmatpush1.msra.mxu0 0.0
    %338 = vmatprep.subr.mxu0 0.0
    %339 = vmatpush1.msra.mxu0 0.0
    %340 = vmatprep.subr.mxu0 0.0
    %341 = vmatpush1.msra.mxu0 0.0
    %342 = vmatprep.subr.mxu0 0.0
    %343 = vmatpush1.msra.mxu0 0.0
    %344 = vmatprep.subr.mxu0 0.0
    %345 = vmatpush1.msra.mxu0 0.0
    %346 = vmatprep.subr.mxu0 0.0
    %347 = vmatpush1.msra.mxu0 0.0
    %348 = vmatprep.subr.mxu0 0.0
    %349 = vmatpush1.msra.mxu0 0.0
    %350 = vmatprep.subr.mxu0 0.0
    %351 = vmatpush1.msra.mxu0 0.0
    %352 = vmatprep.mubr.f32.mxu0 0.0
    %353 = vmatmul.mubr.f32.gmra.mrb[0].mxu0 %v132
    %v354 = vpop.f32.mrb[0].mxu0
    %v355 = vadd.f32 0.0, %v354
    %v356 = vpop.f32.mrb[0].mxu0
    %357 = vdwg.mxu0
    %vm358 = vcmask 31744
    %v360 = vsel %vm358, %v80, 0
    %v363 = vsel %vm358, %v81, 0
    %vm365 = vcmask 1043456
    %v367 = vsel %vm365, %v355, 0
    %369 = vmatprep.subr.mxu0 0.0
    %370 = vmatpush1.msra.mxu0 %v367
    %371 = vmatprep.subr.mxu0 0.0
    %372 = vmatpush1.msra.mxu0 0.0
    %373 = vmatprep.subr.mxu0 0.0
    %374 = vmatpush1.msra.mxu0 0.0
    %375 = vmatprep.subr.mxu0 0.0
    %376 = vmatpush1.msra.mxu0 0.0
    %377 = vmatprep.subr.mxu0 0.0
    %378 = vmatpush1.msra.mxu0 0.0
    %379 = vmatprep.subr.mxu0 0.0
    %380 = vmatpush1.msra.mxu0 0.0
    %381 = vmatprep.subr.mxu0 0.0
    %382 = vmatpush1.msra.mxu0 0.0
    %383 = vmatprep.subr.mxu0 0.0
    %384 = vmatpush1.msra.mxu0 0.0
    %385 = vmatprep.subr.mxu0 0.0
    %386 = vmatpush1.msra.mxu0 0.0
    %387 = vmatprep.subr.mxu0 0.0
    %388 = vmatpush1.msra.mxu0 0.0
    %389 = vmatprep.subr.mxu0 0.0
    %390 = vmatpush1.msra.mxu0 0.0
    %391 = vmatprep.subr.mxu0 0.0
    %392 = vmatpush1.msra.mxu0 0.0
    %393 = vmatprep.subr.mxu0 0.0
    %394 = vmatpush1.msra.mxu0 0.0
    %395 = vmatprep.subr.mxu0 0.0
    %396 = vmatpush1.msra.mxu0 0.0
    %397 = vmatprep.subr.mxu0 0.0
    %398 = vmatpush1.msra.mxu0 0.0
    %399 = vmatprep.subr.mxu0 0.0
    %400 = vmatpush1.msra.mxu0 0.0
    %401 = vmatprep.subr.mxu0 0.0
    %402 = vmatpush1.msra.mxu0 0.0
    %403 = vmatprep.subr.mxu0 0.0
    %404 = vmatpush1.msra.mxu0 0.0
    %405 = vmatprep.subr.mxu0 0.0
    %406 = vmatpush1.msra.mxu0 0.0
    %407 = vmatprep.subr.mxu0 0.0
    %408 = vmatpush1.msra.mxu0 0.0
    %409 = vmatprep.subr.mxu0 0.0
    %410 = vmatpush1.msra.mxu0 0.0
    %411 = vmatprep.subr.mxu0 0.0
    %412 = vmatpush1.msra.mxu0 0.0
    %413 = vmatprep.subr.mxu0 0.0
    %414 = vmatpush1.msra.mxu0 0.0
    %415 = vmatprep.subr.mxu0 0.0
    %416 = vmatpush1.msra.mxu0 0.0
    %417 = vmatprep.subr.mxu0 0.0
    %418 = vmatpush1.msra.mxu0 0.0
    %419 = vmatprep.subr.mxu0 0.0
    %420 = vmatpush1.msra.mxu0 0.0
    %421 = vmatprep.subr.mxu0 0.0
    %422 = vmatpush1.msra.mxu0 0.0
    %423 = vmatprep.subr.mxu0 0.0
    %424 = vmatpush1.msra.mxu0 0.0
    %425 = vmatprep.subr.mxu0 0.0
    %426 = vmatpush1.msra.mxu0 0.0
    %427 = vmatprep.subr.mxu0 0.0
    %428 = vmatpush1.msra.mxu0 0.0
    %429 = vmatprep.subr.mxu0 0.0
    %430 = vmatpush1.msra.mxu0 0.0
    %431 = vmatprep.subr.mxu0 0.0
    %432 = vmatpush1.msra.mxu0 0.0
    %433 = vmatprep.mubr.f32.mxu0 0.0
    %434 = vmatmul.mubr.f32.gmra.mrb[0].mxu0 %v360
    %v435 = vpop.f32.mrb[0].mxu0
    %v436 = vadd.f32 0.0, %v435
    %v437 = vpop.f32.mrb[0].mxu0
    %438 = vmatprep.mubr.f32.mxu0 0.0
    %439 = vmatmul.mubr.f32.gmra.mrb[0].mxu0 %v363
    %v440 = vpop.f32.mrb[0].mxu0
    %v441 = vadd.f32 0.0, %v440
    %v442 = vpop.f32.mrb[0].mxu0
    %443 = vdwg.mxu0
    %v444 = vadd.f32 %v264, %v436
    %v445 = vadd.f32 %v268, %v441
    %vm446 = vcmp.gt.f32.partialorder %v444, 0.0
    %vm447 = vcmp.gt.f32.partialorder %v445, 0.0
    %v448 = vmul.f32 %v444, 0.01
    %v449 = vmul.f32 %v445, 0.01
    %v450 = vsel %vm446, %v444, %v448
    %v451 = vsel %vm447, %v445, %v449
    %v452 = vld [vmem:[%s5] sm:$0x1]
    %v454 = vlaneseq
    %v455 = vshrl.u32 %v454, 7
    %v456 = vsub.s32 0, %v455
    %v457 = vrot.slane %v452, %v456
    %v459 = vmul.f32 %v450, %v457
    %v460 = vmul.f32 %v451, %v457
    %461 = vadd.xlane.f32.xlu0 %v459
    %v462 = vpop.xlane.xlu0 %461
    %463 = vadd.xlane.f32.xlu0 %v460
    %v464 = vpop.xlane.xlu0 %463
    %vm465 = vcmp.gt.f32.partialorder %v462, 0.0
    %vm466 = vcmp.gt.f32.partialorder %v464, 0.0
    %v467 = vmul.f32 %v462, 0.01
    %v468 = vmul.f32 %v464, 0.01
    %v469 = vsel %vm465, %v462, %v467
    %v470 = vsel %vm466, %v464, %v468
    %v471 = vsel %vm76, %v469, -1e+30
    %v472 = vsel %vm77, %v470, -1e+30
    %v473 = vsel %vm358, %v471, -inf
    %v474 = vsel %vm358, %v472, -inf
    %v475 = vmax.f32 %v473, %v474
    %v476 = vrot.slane %v475, 4
    %v477 = vmax.f32 %v475, %v476
    %v478 = vrot.slane %v477, 2
    %v479 = vmax.f32 %v477, %v478
    %v480 = vrot.slane %v479, 1
    %v481 = vmax.f32 %v479, %v480
    %v482 = vsub.f32 %v469, %v481
    %v483 = vsub.f32 %v470, %v481
    %v484 = vmul.f32 %v482, 1.442695
    %v485 = vpow.pop %v484
    %v486 = vmul.f32 %v483, 1.442695
    %v487 = vpow.pop %v486
    %v488 = vsel %vm76, %v485, 0.0
    %v489 = vsel %vm77, %v487, 0.0
    %v490 = vsel %vm358, %v488, 0.0
    %v491 = vsel %vm358, %v489, 0.0
    %v492 = vadd.f32 %v490, %v491
    %v493 = vrot.slane %v492, 4
    %v494 = vadd.f32 %v492, %v493
    %v495 = vrot.slane %v494, 2
    %v496 = vadd.f32 %v494, %v495
    %v497 = vrot.slane %v496, 1
    %v498 = vadd.f32 %v496, %v497
    %v499 = vadd.f32 %v498, 1e-16
    %v500 = vrcp.pop %v499
    %v501 = vmul.f32 %v488, %v500
    %v502 = vmul.f32 %v489, %v500
    %v503 = vsel %vm358, %v501, 0.0
    %504 = vadd.xlane.f32.xlu0 %v503
    %v505 = vpop.xlane.xlu0 %504
    %v506 = vsel %vm358, %v502, 0.0
    %507 = vadd.xlane.f32.xlu0 %v506
    %v508 = vpop.xlane.xlu0 %507
    %v509 = vmul.f32 %v266, %v505
    %v510 = vmul.f32 %v270, %v508
    %v511 = vpack.c.bf16 %v510, %v509
    %v512 = vld [vmem:[%s6] sm:$0x1]
    %v514 = vlaneseq
    %v515 = vshrl.u32 %v514, 7
    %v516 = vsub.s32 0, %v515
    %v517 = vrot.slane %v512, %v516
    %519 = vmatprep.subr.bf16.mxu0 0
    %520 = vmatpush1.bf16.msra.mxu0 %v511
    %521 = vmatprep.subr.bf16.mxu0 0
    %522 = vmatpush1.bf16.msra.mxu0 0
    %523 = vmatprep.subr.bf16.mxu0 0
    %524 = vmatpush1.bf16.msra.mxu0 0
    %525 = vmatprep.subr.bf16.mxu0 0
    %526 = vmatpush1.bf16.msra.mxu0 0
    %527 = vmatprep.subr.bf16.mxu0 0
    %528 = vmatpush1.bf16.msra.mxu0 0
    %529 = vmatprep.subr.bf16.mxu0 0
    %530 = vmatpush1.bf16.msra.mxu0 0
    %531 = vmatprep.subr.bf16.mxu0 0
    %532 = vmatpush1.bf16.msra.mxu0 0
    %533 = vmatprep.subr.bf16.mxu0 0
    %534 = vmatpush1.bf16.msra.mxu0 0
    %535 = vmatprep.subr.bf16.mxu0 0
    %536 = vmatpush1.bf16.msra.mxu0 0
    %537 = vmatprep.subr.bf16.mxu0 0
    %538 = vmatpush1.bf16.msra.mxu0 0
    %539 = vmatprep.subr.bf16.mxu0 0
    %540 = vmatpush1.bf16.msra.mxu0 0
    %541 = vmatprep.subr.bf16.mxu0 0
    %542 = vmatpush1.bf16.msra.mxu0 0
    %543 = vmatprep.subr.bf16.mxu0 0
    %544 = vmatpush1.bf16.msra.mxu0 0
    %545 = vmatprep.subr.bf16.mxu0 0
    %546 = vmatpush1.bf16.msra.mxu0 0
    %547 = vmatprep.subr.bf16.mxu0 0
    %548 = vmatpush1.bf16.msra.mxu0 0
    %549 = vmatprep.subr.bf16.mxu0 0
    %550 = vmatpush1.bf16.msra.mxu0 0
    %551 = vmatprep.mubr.bf16.mxu0 0
    %552 = vmatmul.mubr.bf16.gmra.mrb[0].mxu0 %v90
    %v553 = vpop.f32.mrb[0].mxu0
    %v554 = vadd.f32 %v517, %v553
    %v555 = vpop.f32.mrb[0].mxu0
    %v556 = vpop.f32.mrb[0].mxu0
    %v557 = vpop.f32.mrb[0].mxu0
    %558 = vdwg.mxu0
    %v559 = vadd.f32 %v132, %v554
    %vm560 = vcmp.gt.f32.partialorder %v559, 0.0
    %v561 = vmin.f32 %v559, 0.0
    %v562 = vmul.f32 %v561, 1.442695
    %v563 = vpow.pop %v562
    %v564 = vsub.f32 %v563, 1.0
    %v565 = vsel %vm560, %v559, %v564
    %v566 = vsel %vm365, %v565, 0.0
    %567 = vadd.xlane.f32.xlu0 %v566
    %v568 = vpop.xlane.xlu0 %567
    %v569 = vrcp.pop 128.0
    %v570 = vmul.f32 %v568, %v569
    %v571 = vsub.f32 %v565, %v570
    %v572 = vmul.f32 %v571, %v571
    %v573 = vsel %vm365, %v572, 0.0
    %574 = vadd.xlane.f32.xlu0 %v573
    %v575 = vpop.xlane.xlu0 %574
    %v576 = vmul.f32 %v575, %v569
    %v577 = vadd.f32 %v576, 1e-05
    %v578 = vrsqrt.pop %v577
    %v579 = vmul.f32 %v571, %v578
    %580 = vst [vmem:[#allocation7] sm:$0xf] %v579
    // Predicated region
    $region38: #{tpu_custom_call.1} parent=1 // pred_check
      _
    $region39: #{tpu_custom_call.1} parent=1 // pred_check_branch
      %582 = sbr.rel (0) target = $region41
    $region40: #{tpu_custom_call.1} parent=1 // pred_region
      %s584 = ssub.s32 64, 64
      %585 = vsyncadd [#allocation4], %s584
      %s587 = sshll.u32 [#allocation7], 4
      %s588 = int_to_ptr.vmem [resolvable:$true] %s587
      %590 = dma.vmem_to_hbm [thread:$0]  %s588, 64, %s7, [#allocation4]
    $region41: #{tpu_custom_call.1} parent=1 // pred_fallthru
      _
    // Predicated region
    $region42: #{tpu_custom_call.1} parent=1 // pred_check
      _
    $region43: #{tpu_custom_call.1} parent=1 // pred_check_branch
      %592 = sbr.rel (0) target = $region45
    $region44: #{tpu_custom_call.1} parent=1 // pred_region
      %593 = dma.done [#allocation4], 64
    $region45: #{tpu_custom_call.1} parent=1 // pred_fallthru
      _
    %594 = vsyncpa [#allocation3], 1
    %595 = vsyncpa [#allocation6], 1
    %596 = vsyncpa [#allocation4], 1

</llo_original>
